<compile_context>
chip_gen: v7x
topology: tpu7x:2x2x1
jax: 0.10.0
libtpu: 0.0.40
codegen_flags: <defaults>
</compile_context>

<pallas_src>
import jax
import jax.numpy as jnp
from jax.experimental import pallas as pl
from jax.experimental.pallas import tpu as pltpu

BN_EPS = 1e-5


def ssb3_forward(x, w3x3, w3x1, w1x3, w_avg, b_avg, bn1_g, bn1_b, w1x1, bn2_g, bn2_b,
                 eps=BN_EPS):
    """x: [N, Cin, H, W] f32 (NCHW).  Returns [N, Cout, H, W] f32.

    Matches SkeletonStrengtheningBlock3.forward with stride=1 and BatchNorm in training mode.
    """
    N, Cin, H, W = x.shape
    Cout = w3x3.shape[0]
    HW = H * W
    M = N * HW
    GUARD = ((W + 1 + 127) // 128) * 128        # lane guard band, rounded to vreg alignment
    inv_m = 1.0 / M

    # ---- fold the four parallel convolutions into a single 3x3 weight (+ avg-branch bias) ----
    w_comb = w3x3 + w_avg
    w_comb = w_comb.at[:, :, :, 1].add(w3x1[:, :, :, 0])   # 3x1 sits in the centre column
    w_comb = w_comb.at[:, :, 1, :].add(w1x3[:, :, 0, :])   # 1x3 sits in the centre row
    # [Cout, Cin, ky, kx] -> [Cout, (ky*3+kx)*Cin + cin]  (matches im2col slab row order)
    wk = jnp.transpose(w_comb, (0, 2, 3, 1)).reshape(Cout, 9 * Cin).astype(jnp.float32)
    w11 = w1x1.reshape(Cout, Cout).astype(jnp.float32)      # 1x1 conv == channel matmul

    # ---- per-channel constants packed into one tiny input: [Cout, 5] ----
    consts = jnp.stack([b_avg, bn1_g, bn1_b, bn2_g, bn2_b], axis=1).astype(jnp.float32)

    # ---- precomputed {0,1} border masks per tap (shared across batch): [9, M] ----
    m_idx = jnp.arange(M, dtype=jnp.int32)
    h_idx = (m_idx // W) % H
    w_idx = m_idx % W
    tap_masks = []
    for k in range(9):
        dy, dx = k // 3 - 1, k % 3 - 1
        valid = jnp.ones((M,), dtype=bool)
        if dy == -1:
            valid = valid & (h_idx >= 1)
        if dy == 1:
            valid = valid & (h_idx <= H - 2)
        if dx == -1:
            valid = valid & (w_idx >= 1)
        if dx == 1:
            valid = valid & (w_idx <= W - 2)
        tap_masks.append(valid)
    masks = jnp.stack(tap_masks, axis=0).astype(jnp.float32)   # [9, M]

    # Free reshape (contiguous dims) -- no transpose / pad HBM round-trip before the kernel.
    x3 = x.reshape(N, Cin, HW).astype(jnp.float32)

    def kernel(x_ref, wk_ref, w11_ref, c_ref, m_ref, out_ref, xbuf, pat_ref):
        # Zero the guard bands (aligned 128-lane stores); masked taps only ever read zeros there.
        zg = jnp.zeros((Cin, GUARD), jnp.float32)
        xbuf[:, 0:GUARD] = zg
        xbuf[:, GUARD + M:GUARD + M + GUARD] = zg
        # NC(HW) -> lane-flat [Cin, M]: one aligned 256-lane store per batch image.
        for n in range(N):
            xbuf[:, GUARD + n * HW:GUARD + (n + 1) * HW] = x_ref[n]

        # Fused im2col: 9 statically-offset taps, border-masked with precomputed {0,1} masks,
        # packed into one [9*Cin, M] slab in VMEM scratch.
        for k in range(9):
            dy, dx = k // 3 - 1, k % 3 - 1
            off = GUARD + dy * W + dx                        # static python int
            xs = xbuf[:, off:off + M]                        # [Cin, M], vld absorbs misalignment
            if k != 4:                                       # centre tap needs no mask
                xs = xs * m_ref[k:k + 1, :]
            pat_ref[k * Cin:(k + 1) * Cin, :] = xs

        bias = c_ref[:, 0:1]
        # Single K = 9*Cin GEMM for the folded (3x3 + 3x1 + 1x3 + avg) convolution.
        y1 = jnp.dot(wk_ref[...], pat_ref[...], preferred_element_type=jnp.float32) + bias

        # BatchNorm 1 (training-mode batch stats, two-pass variance), affine folded.
        mean1 = jnp.sum(y1, axis=-1, keepdims=True) * inv_m
        d1 = y1 - mean1
        var1 = jnp.sum(d1 * d1, axis=-1, keepdims=True) * inv_m
        z1 = d1 * (c_ref[:, 1:2] * jax.lax.rsqrt(var1 + eps)) + c_ref[:, 2:3]

        # 1x1 conv = channel mix on the MXU.
        y2 = jnp.dot(w11_ref[...], z1, preferred_element_type=jnp.float32)

        # BatchNorm 2 (two-pass variance) + ReLU.
        mean2 = jnp.sum(y2, axis=-1, keepdims=True) * inv_m
        d2 = y2 - mean2
        var2 = jnp.sum(d2 * d2, axis=-1, keepdims=True) * inv_m
        res = jnp.maximum(d2 * (c_ref[:, 3:4] * jax.lax.rsqrt(var2 + eps)) + c_ref[:, 4:5], 0.0)

        # Lane-dense, aligned stores back to NC(HW); wrapper reshape to NCHW is free.
        for n in range(N):
            out_ref[n] = res[:, n * HW:(n + 1) * HW]

    out3 = pl.pallas_call(
        kernel,
        out_shape=jax.ShapeDtypeStruct((N, Cout, HW), jnp.float32),
        in_specs=[
            pl.BlockSpec((N, Cin, HW), lambda: (0, 0, 0)),
            pl.BlockSpec((Cout, 9 * Cin), lambda: (0, 0)),
            pl.BlockSpec((Cout, Cout), lambda: (0, 0)),
            pl.BlockSpec((Cout, 5), lambda: (0, 0)),
            pl.BlockSpec((9, M), lambda: (0, 0)),
        ],
        out_specs=pl.BlockSpec((N, Cout, HW), lambda: (0, 0, 0)),
        scratch_shapes=[
            pltpu.VMEM((Cin, GUARD + M + GUARD), jnp.float32),   # guard-banded lane-flat input
            pltpu.VMEM((9 * Cin, M), jnp.float32),               # im2col slab for the one GEMM
        ],
    )(x3, wk, w11, consts, masks)

    return out3.reshape(N, Cout, H, W)      # free reshape back to NCHW


def _reference(x, w3x3, w3x1, w1x3, w_avg, b_avg, bn1_g, bn1_b, w1x1, bn2_g, bn2_b,
               eps=BN_EPS):
    """Pure-JAX reference matching the PyTorch module (training-mode BatchNorm, stride=1)."""
    dn = ("NCHW", "OIHW", "NCHW")
    hi = jax.lax.Precision.HIGHEST

    def conv(inp, w, pad):
        return jax.lax.conv_general_dilated(inp, w, (1, 1), pad,
                                            dimension_numbers=dn, precision=hi)

    def bn(y, g, b):
        mu = jnp.mean(y, axis=(0, 2, 3), keepdims=True)
        var = jnp.mean(jnp.square(y - mu), axis=(0, 2, 3), keepdims=True)
        return (y - mu) * jax.lax.rsqrt(var + eps) * g.reshape(1, -1, 1, 1) + b.reshape(1, -1, 1, 1)

    square = conv(x, w3x3, ((1, 1), (1, 1)))
    ver = conv(x, w3x1, ((1, 1), (0, 0)))
    hor = conv(x, w1x3, ((0, 0), (1, 1)))
    avg = conv(x, w_avg, ((1, 1), (1, 1))) + b_avg.reshape(1, -1, 1, 1)
    y = bn(square + ver + hor + avg, bn1_g, bn1_b)
    y = conv(y, w1x1, ((0, 0), (0, 0)))
    y = bn(y, bn2_g, bn2_b)
    return jnp.maximum(y, 0.0)


if __name__ == "__main__":
    key = jax.random.PRNGKey(0)
    ks = jax.random.split(key, 11)

    N, Cin, Cout, H, W = 2, 4, 8, 16, 16

    x = jax.random.normal(ks[0], (N, Cin, H, W), dtype=jnp.float32)
    w3x3 = jax.random.normal(ks[1], (Cout, Cin, 3, 3), dtype=jnp.float32) * 0.1
    w3x1 = jax.random.normal(ks[2], (Cout, Cin, 3, 1), dtype=jnp.float32) * 0.1
    w1x3 = jax.random.normal(ks[3], (Cout, Cin, 1, 3), dtype=jnp.float32) * 0.1
    w_avg = jax.random.normal(ks[4], (Cout, Cin, 3, 3), dtype=jnp.float32) * 0.1
    b_avg = jax.random.normal(ks[5], (Cout,), dtype=jnp.float32) * 0.1
    w1x1 = jax.random.normal(ks[6], (Cout, Cout, 1, 1), dtype=jnp.float32) * 0.2
    # BatchNorm affine params (perturbed from the PyTorch defaults to exercise the folded path).
    bn1_g = 1.0 + 0.1 * jax.random.normal(ks[7], (Cout,), dtype=jnp.float32)
    bn1_b = 0.1 * jax.random.normal(ks[8], (Cout,), dtype=jnp.float32)
    bn2_g = 1.0 + 0.1 * jax.random.normal(ks[9], (Cout,), dtype=jnp.float32)
    bn2_b = 0.1 * jax.random.normal(ks[10], (Cout,), dtype=jnp.float32)

    args = (x, w3x3, w3x1, w1x3, w_avg, b_avg, bn1_g, bn1_b, w1x1, bn2_g, bn2_b)

    out = jax.block_until_ready(jax.jit(ssb3_forward)(*args))
    ref = jax.block_until_ready(_reference(*args))

    assert out.shape == (N, Cout, H, W)
    assert jnp.allclose(out, ref, atol=1e-4, rtol=1e-4), "mismatch vs reference"

    print("KERNEL_OK")
</pallas_src>

<mosaic_0001>
module attributes {stable_mosaic.version = 11 : i64} {
  func.func @kernel(%arg0: memref<2x4x256xf32, #tpu.memory_space<vmem>>, %arg1: memref<8x36xf32, #tpu.memory_space<vmem>>, %arg2: memref<8x8xf32, #tpu.memory_space<vmem>>, %arg3: memref<8x5xf32, #tpu.memory_space<vmem>>, %arg4: memref<9x512xf32, #tpu.memory_space<vmem>>, %arg5: memref<2x8x256xf32, #tpu.memory_space<vmem>>, %arg6: memref<4x768xf32, #tpu.memory_space<vmem>>, %arg7: memref<36x512xf32, #tpu.memory_space<vmem>>) attributes {dimension_semantics = [], scalar_prefetch = 0 : i64, scratch_operands = 2 : i64, tpu.core_type = #tpu.core_type<tc>} {
    %cst = arith.constant 0.000000e+00 : f32
    %0 = vector.broadcast %cst : f32 to vector<4x128xf32>
    %c0 = arith.constant 0 : index
    %c0_0 = arith.constant 0 : index
    %1 = vector.load %arg6[%c0, %c0_0] : memref<4x768xf32, #tpu.memory_space<vmem>>, vector<4x128xf32>
    tpu.vector_store %arg6[%c0, %c0_0], %0 {strides = array<i32>} : memref<4x768xf32, #tpu.memory_space<vmem>>, vector<4x128xf32>,
    %c0_1 = arith.constant 0 : index
    %c640 = arith.constant 640 : index
    %2 = vector.load %arg6[%c0_1, %c640] : memref<4x768xf32, #tpu.memory_space<vmem>>, vector<4x128xf32>
    tpu.vector_store %arg6[%c0_1, %c640], %0 {strides = array<i32>} : memref<4x768xf32, #tpu.memory_space<vmem>>, vector<4x128xf32>,
    %c0_2 = arith.constant 0 : index
    %c0_3 = arith.constant 0 : index
    %c0_4 = arith.constant 0 : index
    %3 = vector.load %arg0[%c0_2, %c0_3, %c0_4] : memref<2x4x256xf32, #tpu.memory_space<vmem>>, vector<1x4x256xf32>
    %4 = vector.shape_cast %3 : vector<1x4x256xf32> to vector<4x256xf32>
    %c0_5 = arith.constant 0 : index
    %c128 = arith.constant 128 : index
    %5 = vector.load %arg6[%c0_5, %c128] : memref<4x768xf32, #tpu.memory_space<vmem>>, vector<4x256xf32>
    tpu.vector_store %arg6[%c0_5, %c128], %4 {strides = array<i32>} : memref<4x768xf32, #tpu.memory_space<vmem>>, vector<4x256xf32>,
    %c1 = arith.constant 1 : index
    %c0_6 = arith.constant 0 : index
    %c0_7 = arith.constant 0 : index
    %6 = vector.load %arg0[%c1, %c0_6, %c0_7] : memref<2x4x256xf32, #tpu.memory_space<vmem>>, vector<1x4x256xf32>
    %7 = vector.shape_cast %6 : vector<1x4x256xf32> to vector<4x256xf32>
    %c0_8 = arith.constant 0 : index
    %c384 = arith.constant 384 : index
    %8 = vector.load %arg6[%c0_8, %c384] : memref<4x768xf32, #tpu.memory_space<vmem>>, vector<4x256xf32>
    tpu.vector_store %arg6[%c0_8, %c384], %7 {strides = array<i32>} : memref<4x768xf32, #tpu.memory_space<vmem>>, vector<4x256xf32>,
    %c0_9 = arith.constant 0 : index
    %c111 = arith.constant 111 : index
    %9 = vector.load %arg6[%c0_9, %c111] : memref<4x768xf32, #tpu.memory_space<vmem>>, vector<4x512xf32>
    %c0_10 = arith.constant 0 : index
    %c0_11 = arith.constant 0 : index
    %10 = vector.load %arg4[%c0_10, %c0_11] : memref<9x512xf32, #tpu.memory_space<vmem>>, vector<1x512xf32>
    %11 = vector.broadcast %10 : vector<1x512xf32> to vector<4x512xf32>
    %12 = arith.mulf %9, %11 : vector<4x512xf32>
    %c0_12 = arith.constant 0 : index
    %c0_13 = arith.constant 0 : index
    %13 = vector.load %arg7[%c0_12, %c0_13] : memref<36x512xf32, #tpu.memory_space<vmem>>, vector<4x512xf32>
    tpu.vector_store %arg7[%c0_12, %c0_13], %12 {strides = array<i32>} : memref<36x512xf32, #tpu.memory_space<vmem>>, vector<4x512xf32>,
    %c0_14 = arith.constant 0 : index
    %c112 = arith.constant 112 : index
    %14 = vector.load %arg6[%c0_14, %c112] : memref<4x768xf32, #tpu.memory_space<vmem>>, vector<4x512xf32>
    %c1_15 = arith.constant 1 : index
    %c0_16 = arith.constant 0 : index
    %15 = vector.load %arg4[%c1_15, %c0_16] : memref<9x512xf32, #tpu.memory_space<vmem>>, vector<1x512xf32>
    %16 = vector.broadcast %15 : vector<1x512xf32> to vector<4x512xf32>
    %17 = arith.mulf %14, %16 : vector<4x512xf32>
    %c4 = arith.constant 4 : index
    %c0_17 = arith.constant 0 : index
    %18 = vector.load %arg7[%c4, %c0_17] : memref<36x512xf32, #tpu.memory_space<vmem>>, vector<4x512xf32>
    tpu.vector_store %arg7[%c4, %c0_17], %17 {strides = array<i32>} : memref<36x512xf32, #tpu.memory_space<vmem>>, vector<4x512xf32>,
    %c0_18 = arith.constant 0 : index
    %c113 = arith.constant 113 : index
    %19 = vector.load %arg6[%c0_18, %c113] : memref<4x768xf32, #tpu.memory_space<vmem>>, vector<4x512xf32>
    %c2 = arith.constant 2 : index
    %c0_19 = arith.constant 0 : index
    %20 = vector.load %arg4[%c2, %c0_19] : memref<9x512xf32, #tpu.memory_space<vmem>>, vector<1x512xf32>
    %21 = vector.broadcast %20 : vector<1x512xf32> to vector<4x512xf32>
    %22 = arith.mulf %19, %21 : vector<4x512xf32>
    %c8 = arith.constant 8 : index
    %c0_20 = arith.constant 0 : index
    %23 = vector.load %arg7[%c8, %c0_20] : memref<36x512xf32, #tpu.memory_space<vmem>>, vector<4x512xf32>
    tpu.vector_store %arg7[%c8, %c0_20], %22 {strides = array<i32>} : memref<36x512xf32, #tpu.memory_space<vmem>>, vector<4x512xf32>,
    %c0_21 = arith.constant 0 : index
    %c127 = arith.constant 127 : index
    %24 = vector.load %arg6[%c0_21, %c127] : memref<4x768xf32, #tpu.memory_space<vmem>>, vector<4x512xf32>
    %c3 = arith.constant 3 : index
    %c0_22 = arith.constant 0 : index
    %25 = vector.load %arg4[%c3, %c0_22] : memref<9x512xf32, #tpu.memory_space<vmem>>, vector<1x512xf32>
    %26 = vector.broadcast %25 : vector<1x512xf32> to vector<4x512xf32>
    %27 = arith.mulf %24, %26 : vector<4x512xf32>
    %c12 = arith.constant 12 : index
    %c0_23 = arith.constant 0 : index
    %28 = vector.load %arg7[%c12, %c0_23] : memref<36x512xf32, #tpu.memory_space<vmem>>, vector<4x512xf32>
    tpu.vector_store %arg7[%c12, %c0_23], %27 {strides = array<i32>} : memref<36x512xf32, #tpu.memory_space<vmem>>, vector<4x512xf32>,
    %c0_24 = arith.constant 0 : index
    %c128_25 = arith.constant 128 : index
    %29 = vector.load %arg6[%c0_24, %c128_25] : memref<4x768xf32, #tpu.memory_space<vmem>>, vector<4x512xf32>
    %c16 = arith.constant 16 : index
    %c0_26 = arith.constant 0 : index
    %30 = vector.load %arg7[%c16, %c0_26] : memref<36x512xf32, #tpu.memory_space<vmem>>, vector<4x512xf32>
    tpu.vector_store %arg7[%c16, %c0_26], %29 {strides = array<i32>} : memref<36x512xf32, #tpu.memory_space<vmem>>, vector<4x512xf32>,
    %c0_27 = arith.constant 0 : index
    %c129 = arith.constant 129 : index
    %31 = vector.load %arg6[%c0_27, %c129] : memref<4x768xf32, #tpu.memory_space<vmem>>, vector<4x512xf32>
    %c5 = arith.constant 5 : index
    %c0_28 = arith.constant 0 : index
    %32 = vector.load %arg4[%c5, %c0_28] : memref<9x512xf32, #tpu.memory_space<vmem>>, vector<1x512xf32>
    %33 = vector.broadcast %32 : vector<1x512xf32> to vector<4x512xf32>
    %34 = arith.mulf %31, %33 : vector<4x512xf32>
    %c20 = arith.constant 20 : index
    %c0_29 = arith.constant 0 : index
    %35 = vector.load %arg7[%c20, %c0_29] : memref<36x512xf32, #tpu.memory_space<vmem>>, vector<4x512xf32>
    tpu.vector_store %arg7[%c20, %c0_29], %34 {strides = array<i32>} : memref<36x512xf32, #tpu.memory_space<vmem>>, vector<4x512xf32>,
    %c0_30 = arith.constant 0 : index
    %c143 = arith.constant 143 : index
    %36 = vector.load %arg6[%c0_30, %c143] : memref<4x768xf32, #tpu.memory_space<vmem>>, vector<4x512xf32>
    %c6 = arith.constant 6 : index
    %c0_31 = arith.constant 0 : index
    %37 = vector.load %arg4[%c6, %c0_31] : memref<9x512xf32, #tpu.memory_space<vmem>>, vector<1x512xf32>
    %38 = vector.broadcast %37 : vector<1x512xf32> to vector<4x512xf32>
    %39 = arith.mulf %36, %38 : vector<4x512xf32>
    %c24 = arith.constant 24 : index
    %c0_32 = arith.constant 0 : index
    %40 = vector.load %arg7[%c24, %c0_32] : memref<36x512xf32, #tpu.memory_space<vmem>>, vector<4x512xf32>
    tpu.vector_store %arg7[%c24, %c0_32], %39 {strides = array<i32>} : memref<36x512xf32, #tpu.memory_space<vmem>>, vector<4x512xf32>,
    %c0_33 = arith.constant 0 : index
    %c144 = arith.constant 144 : index
    %41 = vector.load %arg6[%c0_33, %c144] : memref<4x768xf32, #tpu.memory_space<vmem>>, vector<4x512xf32>
    %c7 = arith.constant 7 : index
    %c0_34 = arith.constant 0 : index
    %42 = vector.load %arg4[%c7, %c0_34] : memref<9x512xf32, #tpu.memory_space<vmem>>, vector<1x512xf32>
    %43 = vector.broadcast %42 : vector<1x512xf32> to vector<4x512xf32>
    %44 = arith.mulf %41, %43 : vector<4x512xf32>
    %c28 = arith.constant 28 : index
    %c0_35 = arith.constant 0 : index
    %45 = vector.load %arg7[%c28, %c0_35] : memref<36x512xf32, #tpu.memory_space<vmem>>, vector<4x512xf32>
    tpu.vector_store %arg7[%c28, %c0_35], %44 {strides = array<i32>} : memref<36x512xf32, #tpu.memory_space<vmem>>, vector<4x512xf32>,
    %c0_36 = arith.constant 0 : index
    %c145 = arith.constant 145 : index
    %46 = vector.load %arg6[%c0_36, %c145] : memref<4x768xf32, #tpu.memory_space<vmem>>, vector<4x512xf32>
    %c8_37 = arith.constant 8 : index
    %c0_38 = arith.constant 0 : index
    %47 = vector.load %arg4[%c8_37, %c0_38] : memref<9x512xf32, #tpu.memory_space<vmem>>, vector<1x512xf32>
    %48 = vector.broadcast %47 : vector<1x512xf32> to vector<4x512xf32>
    %49 = arith.mulf %46, %48 : vector<4x512xf32>
    %c32 = arith.constant 32 : index
    %c0_39 = arith.constant 0 : index
    %50 = vector.load %arg7[%c32, %c0_39] : memref<36x512xf32, #tpu.memory_space<vmem>>, vector<4x512xf32>
    tpu.vector_store %arg7[%c32, %c0_39], %49 {strides = array<i32>} : memref<36x512xf32, #tpu.memory_space<vmem>>, vector<4x512xf32>,
    %c0_40 = arith.constant 0 : index
    %c0_41 = arith.constant 0 : index
    %51 = vector.load %arg3[%c0_40, %c0_41] : memref<8x5xf32, #tpu.memory_space<vmem>>, vector<8x1xf32>
    %c0_42 = arith.constant 0 : index
    %c0_43 = arith.constant 0 : index
    %52 = vector.load %arg1[%c0_42, %c0_43] : memref<8x36xf32, #tpu.memory_space<vmem>>, vector<8x36xf32>
    %c0_44 = arith.constant 0 : index
    %c0_45 = arith.constant 0 : index
    %53 = vector.load %arg7[%c0_44, %c0_45] : memref<36x512xf32, #tpu.memory_space<vmem>>, vector<36x512xf32>
    %cst_46 = arith.constant dense<0.000000e+00> : vector<8x512xf32>
    %54 = tpu.matmul %52, %53, %cst_46 {dimension_numbers = #tpu.dot_dimension_numbers<[1], [0], [0], [1], [0, 0, 1, 1], [], []>} : vector<8x36xf32>, vector<36x512xf32>, vector<8x512xf32> -> vector<8x512xf32>
    %55 = vector.broadcast %51 : vector<8x1xf32> to vector<8x512xf32>
    %56 = arith.addf %54, %55 : vector<8x512xf32>
    %cst_47 = arith.constant dense<0.000000e+00> : vector<8xf32>
    %57 = vector.multi_reduction <add>, %56, %cst_47 [1] : vector<8x512xf32> to vector<8xf32>
    %58 = vector.shape_cast %57 : vector<8xf32> to vector<8x1xf32>
    %cst_48 = arith.constant 0.001953125 : f32
    %59 = vector.broadcast %cst_48 : f32 to vector<8x1xf32>
    %60 = arith.mulf %58, %59 : vector<8x1xf32>
    %61 = vector.broadcast %60 : vector<8x1xf32> to vector<8x512xf32>
    %62 = arith.subf %56, %61 : vector<8x512xf32>
    %63 = arith.mulf %62, %62 : vector<8x512xf32>
    %cst_49 = arith.constant dense<0.000000e+00> : vector<8xf32>
    %64 = vector.multi_reduction <add>, %63, %cst_49 [1] : vector<8x512xf32> to vector<8xf32>
    %65 = vector.shape_cast %64 : vector<8xf32> to vector<8x1xf32>
    %cst_50 = arith.constant 0.001953125 : f32
    %66 = vector.broadcast %cst_50 : f32 to vector<8x1xf32>
    %67 = arith.mulf %65, %66 : vector<8x1xf32>
    %c0_51 = arith.constant 0 : index
    %c1_52 = arith.constant 1 : index
    %68 = vector.load %arg3[%c0_51, %c1_52] : memref<8x5xf32, #tpu.memory_space<vmem>>, vector<8x1xf32>
    %cst_53 = arith.constant 9.99999974E-6 : f32
    %69 = vector.broadcast %cst_53 : f32 to vector<8x1xf32>
    %70 = arith.addf %67, %69 : vector<8x1xf32>
    %71 = math.rsqrt %70 : vector<8x1xf32>
    %72 = arith.mulf %68, %71 : vector<8x1xf32>
    %73 = vector.broadcast %72 : vector<8x1xf32> to vector<8x512xf32>
    %74 = arith.mulf %62, %73 : vector<8x512xf32>
    %c0_54 = arith.constant 0 : index
    %c2_55 = arith.constant 2 : index
    %75 = vector.load %arg3[%c0_54, %c2_55] : memref<8x5xf32, #tpu.memory_space<vmem>>, vector<8x1xf32>
    %76 = vector.broadcast %75 : vector<8x1xf32> to vector<8x512xf32>
    %77 = arith.addf %74, %76 : vector<8x512xf32>
    %c0_56 = arith.constant 0 : index
    %c0_57 = arith.constant 0 : index
    %78 = vector.load %arg2[%c0_56, %c0_57] : memref<8x8xf32, #tpu.memory_space<vmem>>, vector<8x8xf32>
    %cst_58 = arith.constant dense<0.000000e+00> : vector<8x512xf32>
    %79 = tpu.matmul %78, %77, %cst_58 {dimension_numbers = #tpu.dot_dimension_numbers<[1], [0], [0], [1], [0, 0, 1, 1], [], []>} : vector<8x8xf32>, vector<8x512xf32>, vector<8x512xf32> -> vector<8x512xf32>
    %cst_59 = arith.constant dense<0.000000e+00> : vector<8xf32>
    %80 = vector.multi_reduction <add>, %79, %cst_59 [1] : vector<8x512xf32> to vector<8xf32>
    %81 = vector.shape_cast %80 : vector<8xf32> to vector<8x1xf32>
    %cst_60 = arith.constant 0.001953125 : f32
    %82 = vector.broadcast %cst_60 : f32 to vector<8x1xf32>
    %83 = arith.mulf %81, %82 : vector<8x1xf32>
    %84 = vector.broadcast %83 : vector<8x1xf32> to vector<8x512xf32>
    %85 = arith.subf %79, %84 : vector<8x512xf32>
    %86 = arith.mulf %85, %85 : vector<8x512xf32>
    %cst_61 = arith.constant dense<0.000000e+00> : vector<8xf32>
    %87 = vector.multi_reduction <add>, %86, %cst_61 [1] : vector<8x512xf32> to vector<8xf32>
    %88 = vector.shape_cast %87 : vector<8xf32> to vector<8x1xf32>
    %cst_62 = arith.constant 0.001953125 : f32
    %89 = vector.broadcast %cst_62 : f32 to vector<8x1xf32>
    %90 = arith.mulf %88, %89 : vector<8x1xf32>
    %c0_63 = arith.constant 0 : index
    %c3_64 = arith.constant 3 : index
    %91 = vector.load %arg3[%c0_63, %c3_64] : memref<8x5xf32, #tpu.memory_space<vmem>>, vector<8x1xf32>
    %cst_65 = arith.constant 9.99999974E-6 : f32
    %92 = vector.broadcast %cst_65 : f32 to vector<8x1xf32>
    %93 = arith.addf %90, %92 : vector<8x1xf32>
    %94 = math.rsqrt %93 : vector<8x1xf32>
    %95 = arith.mulf %91, %94 : vector<8x1xf32>
    %96 = vector.broadcast %95 : vector<8x1xf32> to vector<8x512xf32>
    %97 = arith.mulf %85, %96 : vector<8x512xf32>
    %c0_66 = arith.constant 0 : index
    %c4_67 = arith.constant 4 : index
    %98 = vector.load %arg3[%c0_66, %c4_67] : memref<8x5xf32, #tpu.memory_space<vmem>>, vector<8x1xf32>
    %99 = vector.broadcast %98 : vector<8x1xf32> to vector<8x512xf32>
    %100 = arith.addf %97, %99 : vector<8x512xf32>
    %cst_68 = arith.constant 0.000000e+00 : f32
    %101 = vector.broadcast %cst_68 : f32 to vector<8x512xf32>
    %102 = arith.maximumf %100, %101 : vector<8x512xf32>
    %103 = vector.extract_strided_slice %102 {offsets = [0, 0], sizes = [8, 256], strides = [1, 1]} : vector<8x512xf32> to vector<8x256xf32>
    %c0_69 = arith.constant 0 : index
    %c0_70 = arith.constant 0 : index
    %c0_71 = arith.constant 0 : index
    %104 = vector.load %arg5[%c0_69, %c0_70, %c0_71] : memref<2x8x256xf32, #tpu.memory_space<vmem>>, vector<1x8x256xf32>
    %105 = vector.shape_cast %104 : vector<1x8x256xf32> to vector<8x256xf32>
    %106 = vector.shape_cast %103 : vector<8x256xf32> to vector<1x8x256xf32>
    tpu.vector_store %arg5[%c0_69, %c0_70, %c0_71], %106 {strides = array<i32>} : memref<2x8x256xf32, #tpu.memory_space<vmem>>, vector<1x8x256xf32>,
    %107 = vector.extract_strided_slice %102 {offsets = [0, 256], sizes = [8, 256], strides = [1, 1]} : vector<8x512xf32> to vector<8x256xf32>
    %c1_72 = arith.constant 1 : index
    %c0_73 = arith.constant 0 : index
    %c0_74 = arith.constant 0 : index
    %108 = vector.load %arg5[%c1_72, %c0_73, %c0_74] : memref<2x8x256xf32, #tpu.memory_space<vmem>>, vector<1x8x256xf32>
    %109 = vector.shape_cast %108 : vector<1x8x256xf32> to vector<8x256xf32>
    %110 = vector.shape_cast %107 : vector<8x256xf32> to vector<1x8x256xf32>
    tpu.vector_store %arg5[%c1_72, %c0_73, %c0_74], %110 {strides = array<i32>} : memref<2x8x256xf32, #tpu.memory_space<vmem>>, vector<1x8x256xf32>,
    return
  }
}

</mosaic_0001>

<llo_original>
// kernel: ssb3_forward.1
$region0: #{ssb3_forward.1}
  #allocation0 [shape = 'u32[]', space=smem, size = 0x4, offset = 0x4, fixed_abs, tag = 'smem constant byte address 0x4 - core index']
  #allocation1 [shape = 'u32[144,128]{1,0:T(1,128)}', space=vmem, size = 0x12000, scoped, tag = 'internal scratch']
  #allocation2 [shape = 'f32[4,768]{1,0:T(4,128)}', space=vmem, size = 0x3000, scoped, tag = 'scratch operand']
  #allocation3 [shape = 'f32[36,512]{1,0:T(8,128)}', space=vmem, size = 0x14000, scoped, tag = 'scratch operand']
  %s0 = inlined_call_operand.vmem [shape: f32[2,4,256], index: 0, kind: input, shape index: {}]
  %s1 = inlined_call_operand.vmem [shape: f32[8,36], index: 1, kind: input, shape index: {}]
  %s2 = inlined_call_operand.vmem [shape: f32[8,8], index: 2, kind: input, shape index: {}]
  %s3 = inlined_call_operand.vmem [shape: f32[8,5], index: 3, kind: input, shape index: {}]
  %s4 = inlined_call_operand.vmem [shape: f32[9,512], index: 4, kind: input, shape index: {}]
  %s5 = inlined_call_operand.vmem [shape: f32[2,8,256], index: 5, kind: output, shape index: {}]
  %s6 = sld [smem:[#allocation0]]
  $region30: #{ssb3_forward.1} parent=0
    _
  %s8 = ssub.s32 1, %s6
  %s9 = scalar_select 0, %s8, %s6
  // Predicated region
  $region2: #{ssb3_forward.1} parent=0 // pred_check
    _
  $region3: #{ssb3_forward.1} parent=0 // pred_check_branch
    %11 = sbr.rel (0) target = $region5
  $region4: #{ssb3_forward.1} parent=0 // pred_region
    _
  $region5: #{ssb3_forward.1} parent=0 // pred_fallthru
    _
  // Predicated region
  $region6: #{ssb3_forward.1} parent=0 // pred_check
    _
  $region7: #{ssb3_forward.1} parent=0 // pred_check_branch
    %13 = sbr.rel (0) target = $region9
  $region8: #{ssb3_forward.1} parent=0 // pred_region
    _
  $region9: #{ssb3_forward.1} parent=0 // pred_fallthru
    _
  // Predicated region
  $region10: #{ssb3_forward.1} parent=0 // pred_check
    _
  $region11: #{ssb3_forward.1} parent=0 // pred_check_branch
    %15 = sbr.rel (0) target = $region13
  $region12: #{ssb3_forward.1} parent=0 // pred_region
    _
  $region13: #{ssb3_forward.1} parent=0 // pred_fallthru
    _
  // Predicated region
  $region14: #{ssb3_forward.1} parent=0 // pred_check
    _
  $region15: #{ssb3_forward.1} parent=0 // pred_check_branch
    %17 = sbr.rel (0) target = $region17
  $region16: #{ssb3_forward.1} parent=0 // pred_region
    _
  $region17: #{ssb3_forward.1} parent=0 // pred_fallthru
    _
  // Predicated region
  $region18: #{ssb3_forward.1} parent=0 // pred_check
    _
  $region19: #{ssb3_forward.1} parent=0 // pred_check_branch
    %19 = sbr.rel (0) target = $region21
  $region20: #{ssb3_forward.1} parent=0 // pred_region
    _
  $region21: #{ssb3_forward.1} parent=0 // pred_fallthru
    _
  %20 = vst [vmem:[#allocation2] sm:$0xf] 0.0
  %21 = vst [vmem:[#allocation2 + $0x14] sm:$0xf] 0.0
  %v22 = vld [vmem:[%s0] sm:$0xff]
  %23 = vst [vmem:[#allocation2 + $0x4] sm:$0xff] %v22
  %s24 = scalar_lea.vmem %s0, 8
  %v25 = vld [vmem:[%s24] sm:$0xff]
  %26 = vst [vmem:[#allocation2 + $0xc] sm:$0xff] %v25
  %v27 = vld [vmem:[#allocation2] sm:$0xff]
  %v28 = vld [vmem:[#allocation2 + $0x8] sm:$0xff]
  %v29 = vld [vmem:[#allocation2 + $0x10] sm:$0xf]
  %v30 = vld [vmem:[%s4] ss:$8 sm:$0xf]
  %v32 = vlaneseq
  %v33 = vshrl.u32 %v32, 7
  %v34 = vsub.s32 0, %v33
  %v35 = vrot.slane %v30, %v34
  %v36 = vlaneseq
  %v37 = vshrl.u32 %v36, 7
  %v38 = vsub.s32 1, %v37
  %v39 = vrot.slane %v30, %v38
  %v40 = vlaneseq
  %v41 = vshrl.u32 %v40, 7
  %v42 = vsub.s32 2, %v41
  %v43 = vrot.slane %v30, %v42
  %v44 = vlaneseq
  %v45 = vshrl.u32 %v44, 7
  %v46 = vsub.s32 3, %v45
  %v47 = vrot.slane %v30, %v46
  %v48 = vcombine.low %v35, %v39
  %v49 = vcombine.low %v43, %v47
  %50 = vrot.lane.b32.xlu0 %v48, 111
  %v51 = vpop.permute.xlu0 %50
  %52 = vrot.lane.b32.xlu0 %v49, 111
  %v53 = vpop.permute.xlu0 %52
  %v54 = vrot.slane %v51, 4
  %v55 = vrot.slane %v53, 4
  %vm56 = vcmask 908288
  %v57 = vsel %vm56, %v54, %v51
  %vm58 = vcmask 1043456
  %v59 = vsel %vm58, %v54, %v55
  %v60 = vsel %vm56, %v59, %v53
  %v64 = vmul.f32 %v27, %v57
  %v65 = vmul.f32 %v28, %v60
  %v66 = vmul.f32 %v29, %v55
  %v70 = vcombine.high %v64, %v64
  %v71 = vcombine.high %v65, %v65
  %72 = vrot.lane.b32.xlu0 %v64, 17
  %v73 = vpop.permute.xlu0 %72
  %74 = vrot.lane.b32.xlu0 %v70, 17
  %v75 = vpop.permute.xlu0 %74
  %76 = vrot.lane.b32.xlu0 %v65, 17
  %v77 = vpop.permute.xlu0 %76
  %78 = vrot.lane.b32.xlu0 %v71, 17
  %v79 = vpop.permute.xlu0 %78
  %80 = vrot.lane.b32.xlu0 %v66, 17
  %v81 = vpop.permute.xlu0 %80
  %vm82 = vcmask 138240
  %v83 = vsel %vm82, %v73, %v75
  %v84 = vsel %vm82, %v75, %v77
  %v85 = vsel %vm82, %v77, %v79
  %v86 = vsel %vm82, %v79, %v81
  %91 = vst [vmem:[#allocation3] sm:$0xf] %v83
  %92 = vst [vmem:[#allocation3 + $0x8] sm:$0xf] %v84
  %93 = vst [vmem:[#allocation3 + $0x10] sm:$0xf] %v85
  %94 = vst [vmem:[#allocation3 + $0x18] sm:$0xf] %v86
  %v95 = vld [vmem:[#allocation2] sm:$0xff]
  %v96 = vld [vmem:[#allocation2 + $0x8] sm:$0xff]
  %v97 = vld [vmem:[#allocation2 + $0x10] sm:$0xf]
  %s98 = scalar_lea.vmem %s4, 1
  %v99 = vld [vmem:[%s98] ss:$8 sm:$0xf]
  %v101 = vlaneseq
  %v102 = vshrl.u32 %v101, 7
  %v103 = vsub.s32 0, %v102
  %v104 = vrot.slane %v99, %v103
  %v105 = vlaneseq
  %v106 = vshrl.u32 %v105, 7
  %v107 = vsub.s32 1, %v106
  %v108 = vrot.slane %v99, %v107
  %v109 = vlaneseq
  %v110 = vshrl.u32 %v109, 7
  %v111 = vsub.s32 2, %v110
  %v112 = vrot.slane %v99, %v111
  %v113 = vlaneseq
  %v114 = vshrl.u32 %v113, 7
  %v115 = vsub.s32 3, %v114
  %v116 = vrot.slane %v99, %v115
  %v117 = vcombine.low %v104, %v108
  %v118 = vcombine.low %v112, %v116
  %119 = vrot.lane.b32.xlu0 %v117, 112
  %v120 = vpop.permute.xlu0 %119
  %121 = vrot.lane.b32.xlu0 %v118, 112
  %v122 = vpop.permute.xlu0 %121
  %v123 = vrot.slane %v120, 4
  %v124 = vrot.slane %v122, 4
  %vm125 = vcmask 916480
  %v126 = vsel %vm125, %v123, %v120
  %v127 = vsel %vm58, %v123, %v124
  %v128 = vsel %vm125, %v127, %v122
  %v132 = vmul.f32 %v95, %v126
  %v133 = vmul.f32 %v96, %v128
  %v134 = vmul.f32 %v97, %v124
  %v138 = vcombine.low %v132, %v132
  %v139 = vcombine.low %v133, %v133
  %v140 = vcombine.low %v134, %v134
  %141 = vrot.lane.b32.xlu0 %v138, 16
  %v142 = vpop.permute.xlu0 %141
  %143 = vrot.lane.b32.xlu0 %v132, 16
  %v144 = vpop.permute.xlu0 %143
  %145 = vrot.lane.b32.xlu0 %v139, 16
  %v146 = vpop.permute.xlu0 %145
  %147 = vrot.lane.b32.xlu0 %v133, 16
  %v148 = vpop.permute.xlu0 %147
  %149 = vrot.lane.b32.xlu0 %v140, 16
  %v150 = vpop.permute.xlu0 %149
  %vm151 = vcmask 130048
  %v152 = vsel %vm151, %v142, %v144
  %v153 = vsel %vm151, %v144, %v146
  %v154 = vsel %vm151, %v146, %v148
  %v155 = vsel %vm151, %v148, %v150
  %160 = vst [vmem:[#allocation3] sm:$0xf0] %v152
  %161 = vst [vmem:[#allocation3 + $0x8] sm:$0xf0] %v153
  %162 = vst [vmem:[#allocation3 + $0x10] sm:$0xf0] %v154
  %163 = vst [vmem:[#allocation3 + $0x18] sm:$0xf0] %v155
  %v164 = vld [vmem:[#allocation2] sm:$0xff]
  %v165 = vld [vmem:[#allocation2 + $0x8] sm:$0xff]
  %v166 = vld [vmem:[#allocation2 + $0x10] sm:$0xf]
  %s167 = scalar_lea.vmem %s4, 2
  %v168 = vld [vmem:[%s167] ss:$8 sm:$0xf]
  %v170 = vlaneseq
  %v171 = vshrl.u32 %v170, 7
  %v172 = vsub.s32 0, %v171
  %v173 = vrot.slane %v168, %v172
  %v174 = vlaneseq
  %v175 = vshrl.u32 %v174, 7
  %v176 = vsub.s32 1, %v175
  %v177 = vrot.slane %v168, %v176
  %v178 = vlaneseq
  %v179 = vshrl.u32 %v178, 7
  %v180 = vsub.s32 2, %v179
  %v181 = vrot.slane %v168, %v180
  %v182 = vlaneseq
  %v183 = vshrl.u32 %v182, 7
  %v184 = vsub.s32 3, %v183
  %v185 = vrot.slane %v168, %v184
  %v186 = vcombine.low %v173, %v177
  %v187 = vcombine.low %v181, %v185
  %188 = vrot.lane.b32.xlu0 %v186, 113
  %v189 = vpop.permute.xlu0 %188
  %190 = vrot.lane.b32.xlu0 %v187, 113
  %v191 = vpop.permute.xlu0 %190
  %v192 = vrot.slane %v189, 4
  %v193 = vrot.slane %v191, 4
  %vm194 = vcmask 924672
  %v195 = vsel %vm194, %v192, %v189
  %v196 = vsel %vm58, %v192, %v193
  %v197 = vsel %vm194, %v196, %v191
  %v201 = vmul.f32 %v164, %v195
  %v202 = vmul.f32 %v165, %v197
  %v203 = vmul.f32 %v166, %v193
  %v207 = vcombine.high %v201, %v201
  %v208 = vcombine.high %v202, %v202
  %209 = vrot.lane.b32.xlu0 %v201, 15
  %v210 = vpop.permute.xlu0 %209
  %211 = vrot.lane.b32.xlu0 %v207, 15
  %v212 = vpop.permute.xlu0 %211
  %213 = vrot.lane.b32.xlu0 %v202, 15
  %v214 = vpop.permute.xlu0 %213
  %215 = vrot.lane.b32.xlu0 %v208, 15
  %v216 = vpop.permute.xlu0 %215
  %217 = vrot.lane.b32.xlu0 %v203, 15
  %v218 = vpop.permute.xlu0 %217
  %vm219 = vcmask 121856
  %v220 = vsel %vm219, %v210, %v212
  %v221 = vsel %vm219, %v212, %v214
  %v222 = vsel %vm219, %v214, %v216
  %v223 = vsel %vm219, %v216, %v218
  %228 = vst [vmem:[#allocation3 + $0x20] sm:$0xf] %v220
  %229 = vst [vmem:[#allocation3 + $0x28] sm:$0xf] %v221
  %230 = vst [vmem:[#allocation3 + $0x30] sm:$0xf] %v222
  %231 = vst [vmem:[#allocation3 + $0x38] sm:$0xf] %v223
  %v232 = vld [vmem:[#allocation2] sm:$0xff]
  %v233 = vld [vmem:[#allocation2 + $0x8] sm:$0xff]
  %v234 = vld [vmem:[#allocation2 + $0x10] sm:$0xf]
  %s235 = scalar_lea.vmem %s4, 3
  %v236 = vld [vmem:[%s235] ss:$8 sm:$0xf]
  %v238 = vlaneseq
  %v239 = vshrl.u32 %v238, 7
  %v240 = vsub.s32 0, %v239
  %v241 = vrot.slane %v236, %v240
  %v242 = vlaneseq
  %v243 = vshrl.u32 %v242, 7
  %v244 = vsub.s32 1, %v243
  %v245 = vrot.slane %v236, %v244
  %v246 = vlaneseq
  %v247 = vshrl.u32 %v246, 7
  %v248 = vsub.s32 2, %v247
  %v249 = vrot.slane %v236, %v248
  %v250 = vlaneseq
  %v251 = vshrl.u32 %v250, 7
  %v252 = vsub.s32 3, %v251
  %v253 = vrot.slane %v236, %v252
  %v254 = vcombine.low %v241, %v245
  %v255 = vcombine.low %v249, %v253
  %256 = vrot.lane.b32.xlu0 %v254, 127
  %v257 = vpop.permute.xlu0 %256
  %258 = vrot.lane.b32.xlu0 %v255, 127
  %v259 = vpop.permute.xlu0 %258
  %v260 = vrot.slane %v257, 4
  %v261 = vrot.slane %v259, 4
  %vm262 = vcmask 1039360
  %v263 = vsel %vm262, %v260, %v257
  %v264 = vsel %vm58, %v260, %v261
  %v265 = vsel %vm262, %v264, %v259
  %v269 = vmul.f32 %v232, %v263
  %v270 = vmul.f32 %v233, %v265
  %v271 = vmul.f32 %v234, %v261
  %v275 = vcombine.low %v269, %v269
  %v276 = vcombine.low %v270, %v270
  %v277 = vcombine.low %v271, %v271
  %278 = vrot.lane.b32.xlu0 %v275, 1
  %v279 = vpop.permute.xlu0 %278
  %280 = vrot.lane.b32.xlu0 %v269, 1
  %v281 = vpop.permute.xlu0 %280
  %282 = vrot.lane.b32.xlu0 %v276, 1
  %v283 = vpop.permute.xlu0 %282
  %284 = vrot.lane.b32.xlu0 %v270, 1
  %v285 = vpop.permute.xlu0 %284
  %286 = vrot.lane.b32.xlu0 %v277, 1
  %v287 = vpop.permute.xlu0 %286
  %vm288 = vcmask 7168
  %v289 = vsel %vm288, %v279, %v281
  %v290 = vsel %vm288, %v281, %v283
  %v291 = vsel %vm288, %v283, %v285
  %v292 = vsel %vm288, %v285, %v287
  %297 = vst [vmem:[#allocation3 + $0x20] sm:$0xf0] %v289
  %298 = vst [vmem:[#allocation3 + $0x28] sm:$0xf0] %v290
  %299 = vst [vmem:[#allocation3 + $0x30] sm:$0xf0] %v291
  %300 = vst [vmem:[#allocation3 + $0x38] sm:$0xf0] %v292
  %v301 = vld [vmem:[#allocation2 + $0x4] sm:$0xff]
  %v302 = vld [vmem:[#allocation2 + $0xc] sm:$0xff]
  %v305 = vcombine.high %v301, %v301
  %v306 = vcombine.high %v302, %v302
  %309 = vst [vmem:[#allocation3 + $0x40] sm:$0xf] %v301
  %310 = vst [vmem:[#allocation3 + $0x48] sm:$0xf] %v305
  %311 = vst [vmem:[#allocation3 + $0x50] sm:$0xf] %v302
  %312 = vst [vmem:[#allocation3 + $0x58] sm:$0xf] %v306
  %v313 = vld [vmem:[#allocation2 + $0x4] sm:$0xff]
  %v314 = vld [vmem:[#allocation2 + $0xc] sm:$0xff]
  %v315 = vld [vmem:[#allocation2 + $0x14] sm:$0xf]
  %s316 = scalar_lea.vmem %s4, 5
  %v317 = vld [vmem:[%s316] ss:$8 sm:$0xf]
  %v319 = vlaneseq
  %v320 = vshrl.u32 %v319, 7
  %v321 = vsub.s32 0, %v320
  %v322 = vrot.slane %v317, %v321
  %v323 = vlaneseq
  %v324 = vshrl.u32 %v323, 7
  %v325 = vsub.s32 1, %v324
  %v326 = vrot.slane %v317, %v325
  %v327 = vlaneseq
  %v328 = vshrl.u32 %v327, 7
  %v329 = vsub.s32 2, %v328
  %v330 = vrot.slane %v317, %v329
  %v331 = vlaneseq
  %v332 = vshrl.u32 %v331, 7
  %v333 = vsub.s32 3, %v332
  %v334 = vrot.slane %v317, %v333
  %v335 = vcombine.low %v322, %v326
  %v336 = vcombine.low %v330, %v334
  %337 = vrot.lane.b32.xlu0 %v335, 1
  %v338 = vpop.permute.xlu0 %337
  %339 = vrot.lane.b32.xlu0 %v336, 1
  %v340 = vpop.permute.xlu0 %339
  %v341 = vrot.slane %v338, 4
  %v342 = vrot.slane %v340, 4
  %v343 = vsel %vm288, %v341, %v338
  %v344 = vsel %vm58, %v341, %v342
  %v345 = vsel %vm288, %v344, %v340
  %v349 = vmul.f32 %v313, %v343
  %v350 = vmul.f32 %v314, %v345
  %v351 = vmul.f32 %v315, %v342
  %v355 = vcombine.low %v349, %v349
  %v356 = vcombine.low %v350, %v350
  %v357 = vcombine.low %v351, %v351
  %358 = vrot.lane.b32.xlu0 %v355, 127
  %v359 = vpop.permute.xlu0 %358
  %360 = vrot.lane.b32.xlu0 %v349, 127
  %v361 = vpop.permute.xlu0 %360
  %362 = vrot.lane.b32.xlu0 %v356, 127
  %v363 = vpop.permute.xlu0 %362
  %364 = vrot.lane.b32.xlu0 %v350, 127
  %v365 = vpop.permute.xlu0 %364
  %366 = vrot.lane.b32.xlu0 %v357, 127
  %v367 = vpop.permute.xlu0 %366
  %v368 = vsel %vm262, %v359, %v361
  %v369 = vsel %vm262, %v361, %v363
  %v370 = vsel %vm262, %v363, %v365
  %v371 = vsel %vm262, %v365, %v367
  %376 = vst [vmem:[#allocation3 + $0x40] sm:$0xf0] %v368
  %377 = vst [vmem:[#allocation3 + $0x48] sm:$0xf0] %v369
  %378 = vst [vmem:[#allocation3 + $0x50] sm:$0xf0] %v370
  %379 = vst [vmem:[#allocation3 + $0x58] sm:$0xf0] %v371
  %v380 = vld [vmem:[#allocation2 + $0x4] sm:$0xff]
  %v381 = vld [vmem:[#allocation2 + $0xc] sm:$0xff]
  %v382 = vld [vmem:[#allocation2 + $0x14] sm:$0xf]
  %s383 = scalar_lea.vmem %s4, 6
  %v384 = vld [vmem:[%s383] ss:$8 sm:$0xf]
  %v386 = vlaneseq
  %v387 = vshrl.u32 %v386, 7
  %v388 = vsub.s32 0, %v387
  %v389 = vrot.slane %v384, %v388
  %v390 = vlaneseq
  %v391 = vshrl.u32 %v390, 7
  %v392 = vsub.s32 1, %v391
  %v393 = vrot.slane %v384, %v392
  %v394 = vlaneseq
  %v395 = vshrl.u32 %v394, 7
  %v396 = vsub.s32 2, %v395
  %v397 = vrot.slane %v384, %v396
  %v398 = vlaneseq
  %v399 = vshrl.u32 %v398, 7
  %v400 = vsub.s32 3, %v399
  %v401 = vrot.slane %v384, %v400
  %v402 = vcombine.low %v389, %v393
  %v403 = vcombine.low %v397, %v401
  %404 = vrot.lane.b32.xlu0 %v402, 15
  %v405 = vpop.permute.xlu0 %404
  %406 = vrot.lane.b32.xlu0 %v403, 15
  %v407 = vpop.permute.xlu0 %406
  %v408 = vrot.slane %v405, 4
  %v409 = vrot.slane %v407, 4
  %v410 = vsel %vm219, %v408, %v405
  %v411 = vsel %vm58, %v408, %v409
  %v412 = vsel %vm219, %v411, %v407
  %v416 = vmul.f32 %v380, %v410
  %v417 = vmul.f32 %v381, %v412
  %v418 = vmul.f32 %v382, %v409
  %v422 = vcombine.high %v416, %v416
  %v423 = vcombine.high %v417, %v417
  %424 = vrot.lane.b32.xlu0 %v416, 113
  %v425 = vpop.permute.xlu0 %424
  %426 = vrot.lane.b32.xlu0 %v422, 113
  %v427 = vpop.permute.xlu0 %426
  %428 = vrot.lane.b32.xlu0 %v417, 113
  %v429 = vpop.permute.xlu0 %428
  %430 = vrot.lane.b32.xlu0 %v423, 113
  %v431 = vpop.permute.xlu0 %430
  %432 = vrot.lane.b32.xlu0 %v418, 113
  %v433 = vpop.permute.xlu0 %432
  %v434 = vsel %vm194, %v425, %v427
  %v435 = vsel %vm194, %v427, %v429
  %v436 = vsel %vm194, %v429, %v431
  %v437 = vsel %vm194, %v431, %v433
  %442 = vst [vmem:[#allocation3 + $0x60] sm:$0xf] %v434
  %443 = vst [vmem:[#allocation3 + $0x68] sm:$0xf] %v435
  %444 = vst [vmem:[#allocation3 + $0x70] sm:$0xf] %v436
  %445 = vst [vmem:[#allocation3 + $0x78] sm:$0xf] %v437
  %v446 = vld [vmem:[#allocation2 + $0x4] sm:$0xff]
  %v447 = vld [vmem:[#allocation2 + $0xc] sm:$0xff]
  %v448 = vld [vmem:[#allocation2 + $0x14] sm:$0xf]
  %s449 = scalar_lea.vmem %s4, 7
  %v450 = vld [vmem:[%s449] ss:$8 sm:$0xf]
  %v452 = vlaneseq
  %v453 = vshrl.u32 %v452, 7
  %v454 = vsub.s32 0, %v453
  %v455 = vrot.slane %v450, %v454
  %v456 = vlaneseq
  %v457 = vshrl.u32 %v456, 7
  %v458 = vsub.s32 1, %v457
  %v459 = vrot.slane %v450, %v458
  %v460 = vlaneseq
  %v461 = vshrl.u32 %v460, 7
  %v462 = vsub.s32 2, %v461
  %v463 = vrot.slane %v450, %v462
  %v464 = vlaneseq
  %v465 = vshrl.u32 %v464, 7
  %v466 = vsub.s32 3, %v465
  %v467 = vrot.slane %v450, %v466
  %v468 = vcombine.low %v455, %v459
  %v469 = vcombine.low %v463, %v467
  %470 = vrot.lane.b32.xlu0 %v468, 16
  %v471 = vpop.permute.xlu0 %470
  %472 = vrot.lane.b32.xlu0 %v469, 16
  %v473 = vpop.permute.xlu0 %472
  %v474 = vrot.slane %v471, 4
  %v475 = vrot.slane %v473, 4
  %v476 = vsel %vm151, %v474, %v471
  %v477 = vsel %vm58, %v474, %v475
  %v478 = vsel %vm151, %v477, %v473
  %v482 = vmul.f32 %v446, %v476
  %v483 = vmul.f32 %v447, %v478
  %v484 = vmul.f32 %v448, %v475
  %v488 = vcombine.low %v482, %v482
  %v489 = vcombine.low %v483, %v483
  %v490 = vcombine.low %v484, %v484
  %491 = vrot.lane.b32.xlu0 %v488, 112
  %v492 = vpop.permute.xlu0 %491
  %493 = vrot.lane.b32.xlu0 %v482, 112
  %v494 = vpop.permute.xlu0 %493
  %495 = vrot.lane.b32.xlu0 %v489, 112
  %v496 = vpop.permute.xlu0 %495
  %497 = vrot.lane.b32.xlu0 %v483, 112
  %v498 = vpop.permute.xlu0 %497
  %499 = vrot.lane.b32.xlu0 %v490, 112
  %v500 = vpop.permute.xlu0 %499
  %v501 = vsel %vm125, %v492, %v494
  %v502 = vsel %vm125, %v494, %v496
  %v503 = vsel %vm125, %v496, %v498
  %v504 = vsel %vm125, %v498, %v500
  %509 = vst [vmem:[#allocation3 + $0x60] sm:$0xf0] %v501
  %510 = vst [vmem:[#allocation3 + $0x68] sm:$0xf0] %v502
  %511 = vst [vmem:[#allocation3 + $0x70] sm:$0xf0] %v503
  %512 = vst [vmem:[#allocation3 + $0x78] sm:$0xf0] %v504
  %v513 = vld [vmem:[#allocation2 + $0x4] sm:$0xff]
  %v514 = vld [vmem:[#allocation2 + $0xc] sm:$0xff]
  %v515 = vld [vmem:[#allocation2 + $0x14] sm:$0xf]
  %s516 = scalar_lea.vmem %s4, 32
  %v517 = vld [vmem:[%s516] ss:$8 sm:$0xf]
  %v519 = vlaneseq
  %v520 = vshrl.u32 %v519, 7
  %v521 = vsub.s32 0, %v520
  %v522 = vrot.slane %v517, %v521
  %v523 = vlaneseq
  %v524 = vshrl.u32 %v523, 7
  %v525 = vsub.s32 1, %v524
  %v526 = vrot.slane %v517, %v525
  %v527 = vlaneseq
  %v528 = vshrl.u32 %v527, 7
  %v529 = vsub.s32 2, %v528
  %v530 = vrot.slane %v517, %v529
  %v531 = vlaneseq
  %v532 = vshrl.u32 %v531, 7
  %v533 = vsub.s32 3, %v532
  %v534 = vrot.slane %v517, %v533
  %v535 = vcombine.low %v522, %v526
  %v536 = vcombine.low %v530, %v534
  %537 = vrot.lane.b32.xlu0 %v535, 17
  %v538 = vpop.permute.xlu0 %537
  %539 = vrot.lane.b32.xlu0 %v536, 17
  %v540 = vpop.permute.xlu0 %539
  %v541 = vrot.slane %v538, 4
  %v542 = vrot.slane %v540, 4
  %v543 = vsel %vm82, %v541, %v538
  %v544 = vsel %vm58, %v541, %v542
  %v545 = vsel %vm82, %v544, %v540
  %v549 = vmul.f32 %v513, %v543
  %v550 = vmul.f32 %v514, %v545
  %v551 = vmul.f32 %v515, %v542
  %v555 = vcombine.high %v549, %v549
  %v556 = vcombine.high %v550, %v550
  %557 = vrot.lane.b32.xlu0 %v549, 111
  %v558 = vpop.permute.xlu0 %557
  %559 = vrot.lane.b32.xlu0 %v555, 111
  %v560 = vpop.permute.xlu0 %559
  %561 = vrot.lane.b32.xlu0 %v550, 111
  %v562 = vpop.permute.xlu0 %561
  %563 = vrot.lane.b32.xlu0 %v556, 111
  %v564 = vpop.permute.xlu0 %563
  %565 = vrot.lane.b32.xlu0 %v551, 111
  %v566 = vpop.permute.xlu0 %565
  %v567 = vsel %vm56, %v558, %v560
  %v568 = vsel %vm56, %v560, %v562
  %v569 = vsel %vm56, %v562, %v564
  %v570 = vsel %vm56, %v564, %v566
  %575 = vst [vmem:[#allocation3 + $0x80] sm:$0xf] %v567
  %576 = vst [vmem:[#allocation3 + $0x88] sm:$0xf] %v568
  %577 = vst [vmem:[#allocation3 + $0x90] sm:$0xf] %v569
  %578 = vst [vmem:[#allocation3 + $0x98] sm:$0xf] %v570
  %v579 = vld [vmem:[%s3] sm:$0xff]
  %v580 = vld [vmem:[%s1] sm:$0xff]
  %v581 = vld [vmem:[#allocation3] sm:$0xff]
  %v582 = vld [vmem:[#allocation3 + $0x8] sm:$0xff]
  %v583 = vld [vmem:[#allocation3 + $0x10] sm:$0xff]
  %v584 = vld [vmem:[#allocation3 + $0x18] sm:$0xff]
  %v585 = vld [vmem:[#allocation3 + $0x20] sm:$0xff]
  %v586 = vld [vmem:[#allocation3 + $0x28] sm:$0xff]
  %v587 = vld [vmem:[#allocation3 + $0x30] sm:$0xff]
  %v588 = vld [vmem:[#allocation3 + $0x38] sm:$0xff]
  %v589 = vld [vmem:[#allocation3 + $0x40] sm:$0xff]
  %v590 = vld [vmem:[#allocation3 + $0x48] sm:$0xff]
  %v591 = vld [vmem:[#allocation3 + $0x50] sm:$0xff]
  %v592 = vld [vmem:[#allocation3 + $0x58] sm:$0xff]
  %v593 = vld [vmem:[#allocation3 + $0x60] sm:$0xff]
  %v594 = vld [vmem:[#allocation3 + $0x68] sm:$0xff]
  %v595 = vld [vmem:[#allocation3 + $0x70] sm:$0xff]
  %v596 = vld [vmem:[#allocation3 + $0x78] sm:$0xff]
  %v597 = vld [vmem:[#allocation3 + $0x80] sm:$0xf]
  %v598 = vld [vmem:[#allocation3 + $0x88] sm:$0xf]
  %v599 = vld [vmem:[#allocation3 + $0x90] sm:$0xf]
  %v600 = vld [vmem:[#allocation3 + $0x98] sm:$0xf]
  %602 = vset.pattern.permute.xlu0 0
  %603 = vperm.xlu0 %602, %v579
  %v604 = vpop.permute.xlu0 %603
  %vm606 = vcmask 293888
  %v608 = vsel %vm606, %v580, 0
  %v611 = vsel %vm58, %v597, 0
  %v614 = vsel %vm58, %v598, 0
  %v617 = vsel %vm58, %v599, 0
  %v620 = vsel %vm58, %v600, 0
  %622 = vmatprep.subr.mxu0 %v582
  %623 = vmatpush1.msra.mxu0 %v581
  %624 = vmatprep.subr.mxu0 %v586
  %625 = vmatpush1.msra.mxu0 %v585
  %626 = vmatprep.subr.mxu0 %v590
  %627 = vmatpush1.msra.mxu0 %v589
  %628 = vmatprep.subr.mxu0 %v594
  %629 = vmatpush1.msra.mxu0 %v593
  %630 = vmatprep.subr.mxu0 %v614
  %631 = vmatpush1.msra.mxu0 %v611
  %632 = vmatprep.subr.mxu0 0.0
  %633 = vmatpush1.msra.mxu0 0.0
  %634 = vmatprep.subr.mxu0 0.0
  %635 = vmatpush1.msra.mxu0 0.0
  %636 = vmatprep.subr.mxu0 0.0
  %637 = vmatpush1.msra.mxu0 0.0
  %638 = vmatprep.subr.mxu0 0.0
  %639 = vmatpush1.msra.mxu0 0.0
  %640 = vmatprep.subr.mxu0 0.0
  %641 = vmatpush1.msra.mxu0 0.0
  %642 = vmatprep.subr.mxu0 0.0
  %643 = vmatpush1.msra.mxu0 0.0
  %644 = vmatprep.subr.mxu0 0.0
  %645 = vmatpush1.msra.mxu0 0.0
  %646 = vmatprep.subr.mxu0 0.0
  %647 = vmatpush1.msra.mxu0 0.0
  %648 = vmatprep.subr.mxu0 0.0
  %649 = vmatpush1.msra.mxu0 0.0
  %650 = vmatprep.subr.mxu0 0.0
  %651 = vmatpush1.msra.mxu0 0.0
  %652 = vmatprep.subr.mxu0 0.0
  %653 = vmatpush1.msra.mxu0 0.0
  %654 = vmatprep.subr.mxu0 0.0
  %655 = vmatpush1.msra.mxu0 0.0
  %656 = vmatprep.subr.mxu0 0.0
  %657 = vmatpush1.msra.mxu0 0.0
  %658 = vmatprep.subr.mxu0 0.0
  %659 = vmatpush1.msra.mxu0 0.0
  %660 = vmatprep.subr.mxu0 0.0
  %661 = vmatpush1.msra.mxu0 0.0
  %662 = vmatprep.subr.mxu0 0.0
  %663 = vmatpush1.msra.mxu0 0.0
  %664 = vmatprep.subr.mxu0 0.0
  %665 = vmatpush1.msra.mxu0 0.0
  %666 = vmatprep.subr.mxu0 0.0
  %667 = vmatpush1.msra.mxu0 0.0
  %668 = vmatprep.subr.mxu0 0.0
  %669 = vmatpush1.msra.mxu0 0.0
  %670 = vmatprep.subr.mxu0 0.0
  %671 = vmatpush1.msra.mxu0 0.0
  %672 = vmatprep.subr.mxu0 0.0
  %673 = vmatpush1.msra.mxu0 0.0
  %674 = vmatprep.subr.mxu0 0.0
  %675 = vmatpush1.msra.mxu0 0.0
  %676 = vmatprep.subr.mxu0 0.0
  %677 = vmatpush1.msra.mxu0 0.0
  %678 = vmatprep.subr.mxu0 0.0
  %679 = vmatpush1.msra.mxu0 0.0
  %680 = vmatprep.subr.mxu0 0.0
  %681 = vmatpush1.msra.mxu0 0.0
  %682 = vmatprep.subr.mxu0 0.0
  %683 = vmatpush1.msra.mxu0 0.0
  %684 = vmatprep.subr.mxu0 0.0
  %685 = vmatpush1.msra.mxu0 0.0
  %686 = vmatprep.mubr.f32.mxu0 0.0
  %687 = vmatmul.mubr.f32.gmra.mrb[0].mxu0 %v608
  %v688 = vpop.f32.mrb[0].mxu0
  %v689 = vadd.f32 %v604, %v688
  %v690 = vpop.f32.mrb[0].mxu0
  %v691 = vadd.f32 %v604, %v690
  %692 = vdwg.mxu0
  %693 = vmatprep.subr.mxu0 %v584
  %694 = vmatpush1.msra.mxu0 %v583
  %695 = vmatprep.subr.mxu0 %v588
  %696 = vmatpush1.msra.mxu0 %v587
  %697 = vmatprep.subr.mxu0 %v592
  %698 = vmatpush1.msra.mxu0 %v591
  %699 = vmatprep.subr.mxu0 %v596
  %700 = vmatpush1.msra.mxu0 %v595
  %701 = vmatprep.subr.mxu0 %v620
  %702 = vmatpush1.msra.mxu0 %v617
  %703 = vmatprep.subr.mxu0 0.0
  %704 = vmatpush1.msra.mxu0 0.0
  %705 = vmatprep.subr.mxu0 0.0
  %706 = vmatpush1.msra.mxu0 0.0
  %707 = vmatprep.subr.mxu0 0.0
  %708 = vmatpush1.msra.mxu0 0.0
  %709 = vmatprep.subr.mxu0 0.0
  %710 = vmatpush1.msra.mxu0 0.0
  %711 = vmatprep.subr.mxu0 0.0
  %712 = vmatpush1.msra.mxu0 0.0
  %713 = vmatprep.subr.mxu0 0.0
  %714 = vmatpush1.msra.mxu0 0.0
  %715 = vmatprep.subr.mxu0 0.0
  %716 = vmatpush1.msra.mxu0 0.0
  %717 = vmatprep.subr.mxu0 0.0
  %718 = vmatpush1.msra.mxu0 0.0
  %719 = vmatprep.subr.mxu0 0.0
  %720 = vmatpush1.msra.mxu0 0.0
  %721 = vmatprep.subr.mxu0 0.0
  %722 = vmatpush1.msra.mxu0 0.0
  %723 = vmatprep.subr.mxu0 0.0
  %724 = vmatpush1.msra.mxu0 0.0
  %725 = vmatprep.subr.mxu0 0.0
  %726 = vmatpush1.msra.mxu0 0.0
  %727 = vmatprep.subr.mxu0 0.0
  %728 = vmatpush1.msra.mxu0 0.0
  %729 = vmatprep.subr.mxu0 0.0
  %730 = vmatpush1.msra.mxu0 0.0
  %731 = vmatprep.subr.mxu0 0.0
  %732 = vmatpush1.msra.mxu0 0.0
  %733 = vmatprep.subr.mxu0 0.0
  %734 = vmatpush1.msra.mxu0 0.0
  %735 = vmatprep.subr.mxu0 0.0
  %736 = vmatpush1.msra.mxu0 0.0
  %737 = vmatprep.subr.mxu0 0.0
  %738 = vmatpush1.msra.mxu0 0.0
  %739 = vmatprep.subr.mxu0 0.0
  %740 = vmatpush1.msra.mxu0 0.0
  %741 = vmatprep.subr.mxu0 0.0
  %742 = vmatpush1.msra.mxu0 0.0
  %743 = vmatprep.subr.mxu0 0.0
  %744 = vmatpush1.msra.mxu0 0.0
  %745 = vmatprep.subr.mxu0 0.0
  %746 = vmatpush1.msra.mxu0 0.0
  %747 = vmatprep.subr.mxu0 0.0
  %748 = vmatpush1.msra.mxu0 0.0
  %749 = vmatprep.subr.mxu0 0.0
  %750 = vmatpush1.msra.mxu0 0.0
  %751 = vmatprep.subr.mxu0 0.0
  %752 = vmatpush1.msra.mxu0 0.0
  %753 = vmatprep.subr.mxu0 0.0
  %754 = vmatpush1.msra.mxu0 0.0
  %755 = vmatprep.subr.mxu0 0.0
  %756 = vmatpush1.msra.mxu0 0.0
  %757 = vmatprep.mubr.f32.mxu0 0.0
  %758 = vmatmul.mubr.f32.gmra.mrb[0].mxu0 %v608
  %v759 = vpop.f32.mrb[0].mxu0
  %v760 = vadd.f32 %v604, %v759
  %v761 = vpop.f32.mrb[0].mxu0
  %v762 = vadd.f32 %v604, %v761
  %763 = vdwg.mxu0
  %v764 = vadd.f32 %v689, %v691
  %v765 = vadd.f32 %v764, %v760
  %v766 = vadd.f32 %v765, %v762
  %767 = vadd.xlane.f32.xlu0 %v766
  %v768 = vpop.xlane.xlu0 %767
  %v769 = vmul.f32 %v768, 0.001953125
  %v770 = vsub.f32 %v689, %v769
  %v771 = vsub.f32 %v691, %v769
  %v772 = vsub.f32 %v760, %v769
  %v773 = vsub.f32 %v762, %v769
  %v774 = vmul.f32 %v770, %v770
  %v775 = vmul.f32 %v771, %v771
  %v776 = vmul.f32 %v772, %v772
  %v777 = vmul.f32 %v773, %v773
  %v778 = vadd.f32 %v774, %v775
  %v779 = vadd.f32 %v778, %v776
  %v780 = vadd.f32 %v779, %v777
  %781 = vadd.xlane.f32.xlu0 %v780
  %v782 = vpop.xlane.xlu0 %781
  %v783 = vmul.f32 %v782, 0.001953125
  %v784 = vadd.f32 %v783, 1e-05
  %v785 = vrsqrt.pop %v784
  %v786 = vmul.f32 %v579, %v785
  %788 = vset.pattern.permute.xlu0 1
  %789 = vperm.xlu0 %788, %v786
  %v790 = vpop.permute.xlu0 %789
  %v792 = vmul.f32 %v770, %v790
  %v793 = vmul.f32 %v771, %v790
  %v794 = vmul.f32 %v772, %v790
  %v795 = vmul.f32 %v773, %v790
  %796 = vset.pattern.permute.xlu0 2
  %797 = vperm.xlu0 %796, %v579
  %v798 = vpop.permute.xlu0 %797
  %v800 = vadd.f32 %v792, %v798
  %v801 = vadd.f32 %v793, %v798
  %v802 = vadd.f32 %v794, %v798
  %v803 = vadd.f32 %v795, %v798
  %v804 = vld [vmem:[%s2] sm:$0xff]
  %vm805 = vcmask 64512
  %v807 = vsel %vm805, %v804, 0
  %809 = vmatprep.subr.mxu0 %v801
  %810 = vmatpush1.msra.mxu0 %v800
  %811 = vmatprep.subr.mxu0 0.0
  %812 = vmatpush1.msra.mxu0 0.0
  %813 = vmatprep.subr.mxu0 0.0
  %814 = vmatpush1.msra.mxu0 0.0
  %815 = vmatprep.subr.mxu0 0.0
  %816 = vmatpush1.msra.mxu0 0.0
  %817 = vmatprep.subr.mxu0 0.0
  %818 = vmatpush1.msra.mxu0 0.0
  %819 = vmatprep.subr.mxu0 0.0
  %820 = vmatpush1.msra.mxu0 0.0
  %821 = vmatprep.subr.mxu0 0.0
  %822 = vmatpush1.msra.mxu0 0.0
  %823 = vmatprep.subr.mxu0 0.0
  %824 = vmatpush1.msra.mxu0 0.0
  %825 = vmatprep.subr.mxu0 0.0
  %826 = vmatpush1.msra.mxu0 0.0
  %827 = vmatprep.subr.mxu0 0.0
  %828 = vmatpush1.msra.mxu0 0.0
  %829 = vmatprep.subr.mxu0 0.0
  %830 = vmatpush1.msra.mxu0 0.0
  %831 = vmatprep.subr.mxu0 0.0
  %832 = vmatpush1.msra.mxu0 0.0
  %833 = vmatprep.subr.mxu0 0.0
  %834 = vmatpush1.msra.mxu0 0.0
  %835 = vmatprep.subr.mxu0 0.0
  %836 = vmatpush1.msra.mxu0 0.0
  %837 = vmatprep.subr.mxu0 0.0
  %838 = vmatpush1.msra.mxu0 0.0
  %839 = vmatprep.subr.mxu0 0.0
  %840 = vmatpush1.msra.mxu0 0.0
  %841 = vmatprep.subr.mxu0 0.0
  %842 = vmatpush1.msra.mxu0 0.0
  %843 = vmatprep.subr.mxu0 0.0
  %844 = vmatpush1.msra.mxu0 0.0
  %845 = vmatprep.subr.mxu0 0.0
  %846 = vmatpush1.msra.mxu0 0.0
  %847 = vmatprep.subr.mxu0 0.0
  %848 = vmatpush1.msra.mxu0 0.0
  %849 = vmatprep.subr.mxu0 0.0
  %850 = vmatpush1.msra.mxu0 0.0
  %851 = vmatprep.subr.mxu0 0.0
  %852 = vmatpush1.msra.mxu0 0.0
  %853 = vmatprep.subr.mxu0 0.0
  %854 = vmatpush1.msra.mxu0 0.0
  %855 = vmatprep.subr.mxu0 0.0
  %856 = vmatpush1.msra.mxu0 0.0
  %857 = vmatprep.subr.mxu0 0.0
  %858 = vmatpush1.msra.mxu0 0.0
  %859 = vmatprep.subr.mxu0 0.0
  %860 = vmatpush1.msra.mxu0 0.0
  %861 = vmatprep.subr.mxu0 0.0
  %862 = vmatpush1.msra.mxu0 0.0
  %863 = vmatprep.subr.mxu0 0.0
  %864 = vmatpush1.msra.mxu0 0.0
  %865 = vmatprep.subr.mxu0 0.0
  %866 = vmatpush1.msra.mxu0 0.0
  %867 = vmatprep.subr.mxu0 0.0
  %868 = vmatpush1.msra.mxu0 0.0
  %869 = vmatprep.subr.mxu0 0.0
  %870 = vmatpush1.msra.mxu0 0.0
  %871 = vmatprep.subr.mxu0 0.0
  %872 = vmatpush1.msra.mxu0 0.0
  %873 = vmatprep.mubr.f32.mxu0 0.0
  %874 = vmatmul.mubr.f32.gmra.mrb[0].mxu0 %v807
  %v875 = vpop.f32.mrb[0].mxu0
  %v876 = vadd.f32 0.0, %v875
  %v877 = vpop.f32.mrb[0].mxu0
  %v878 = vadd.f32 0.0, %v877
  %879 = vdwg.mxu0
  %880 = vmatprep.subr.mxu0 %v803
  %881 = vmatpush1.msra.mxu0 %v802
  %882 = vmatprep.subr.mxu0 0.0
  %883 = vmatpush1.msra.mxu0 0.0
  %884 = vmatprep.subr.mxu0 0.0
  %885 = vmatpush1.msra.mxu0 0.0
  %886 = vmatprep.subr.mxu0 0.0
  %887 = vmatpush1.msra.mxu0 0.0
  %888 = vmatprep.subr.mxu0 0.0
  %889 = vmatpush1.msra.mxu0 0.0
  %890 = vmatprep.subr.mxu0 0.0
  %891 = vmatpush1.msra.mxu0 0.0
  %892 = vmatprep.subr.mxu0 0.0
  %893 = vmatpush1.msra.mxu0 0.0
  %894 = vmatprep.subr.mxu0 0.0
  %895 = vmatpush1.msra.mxu0 0.0
  %896 = vmatprep.subr.mxu0 0.0
  %897 = vmatpush1.msra.mxu0 0.0
  %898 = vmatprep.subr.mxu0 0.0
  %899 = vmatpush1.msra.mxu0 0.0
  %900 = vmatprep.subr.mxu0 0.0
  %901 = vmatpush1.msra.mxu0 0.0
  %902 = vmatprep.subr.mxu0 0.0
  %903 = vmatpush1.msra.mxu0 0.0
  %904 = vmatprep.subr.mxu0 0.0
  %905 = vmatpush1.msra.mxu0 0.0
  %906 = vmatprep.subr.mxu0 0.0
  %907 = vmatpush1.msra.mxu0 0.0
  %908 = vmatprep.subr.mxu0 0.0
  %909 = vmatpush1.msra.mxu0 0.0
  %910 = vmatprep.subr.mxu0 0.0
  %911 = vmatpush1.msra.mxu0 0.0
  %912 = vmatprep.subr.mxu0 0.0
  %913 = vmatpush1.msra.mxu0 0.0
  %914 = vmatprep.subr.mxu0 0.0
  %915 = vmatpush1.msra.mxu0 0.0
  %916 = vmatprep.subr.mxu0 0.0
  %917 = vmatpush1.msra.mxu0 0.0
  %918 = vmatprep.subr.mxu0 0.0
  %919 = vmatpush1.msra.mxu0 0.0
  %920 = vmatprep.subr.mxu0 0.0
  %921 = vmatpush1.msra.mxu0 0.0
  %922 = vmatprep.subr.mxu0 0.0
  %923 = vmatpush1.msra.mxu0 0.0
  %924 = vmatprep.subr.mxu0 0.0
  %925 = vmatpush1.msra.mxu0 0.0
  %926 = vmatprep.subr.mxu0 0.0
  %927 = vmatpush1.msra.mxu0 0.0
  %928 = vmatprep.subr.mxu0 0.0
  %929 = vmatpush1.msra.mxu0 0.0
  %930 = vmatprep.subr.mxu0 0.0
  %931 = vmatpush1.msra.mxu0 0.0
  %932 = vmatprep.subr.mxu0 0.0
  %933 = vmatpush1.msra.mxu0 0.0
  %934 = vmatprep.subr.mxu0 0.0
  %935 = vmatpush1.msra.mxu0 0.0
  %936 = vmatprep.subr.mxu0 0.0
  %937 = vmatpush1.msra.mxu0 0.0
  %938 = vmatprep.subr.mxu0 0.0
  %939 = vmatpush1.msra.mxu0 0.0
  %940 = vmatprep.subr.mxu0 0.0
  %941 = vmatpush1.msra.mxu0 0.0
  %942 = vmatprep.subr.mxu0 0.0
  %943 = vmatpush1.msra.mxu0 0.0
  %944 = vmatprep.mubr.f32.mxu0 0.0
  %945 = vmatmul.mubr.f32.gmra.mrb[0].mxu0 %v807
  %v946 = vpop.f32.mrb[0].mxu0
  %v947 = vadd.f32 0.0, %v946
  %v948 = vpop.f32.mrb[0].mxu0
  %v949 = vadd.f32 0.0, %v948
  %950 = vdwg.mxu0
  %v951 = vadd.f32 %v876, %v878
  %v952 = vadd.f32 %v951, %v947
  %v953 = vadd.f32 %v952, %v949
  %954 = vadd.xlane.f32.xlu0 %v953
  %v955 = vpop.xlane.xlu0 %954
  %v956 = vmul.f32 %v955, 0.001953125
  %v957 = vsub.f32 %v876, %v956
  %v958 = vsub.f32 %v878, %v956
  %v959 = vsub.f32 %v947, %v956
  %v960 = vsub.f32 %v949, %v956
  %v961 = vmul.f32 %v957, %v957
  %v962 = vmul.f32 %v958, %v958
  %v963 = vmul.f32 %v959, %v959
  %v964 = vmul.f32 %v960, %v960
  %v965 = vadd.f32 %v961, %v962
  %v966 = vadd.f32 %v965, %v963
  %v967 = vadd.f32 %v966, %v964
  %968 = vadd.xlane.f32.xlu0 %v967
  %v969 = vpop.xlane.xlu0 %968
  %v970 = vmul.f32 %v969, 0.001953125
  %v971 = vadd.f32 %v970, 1e-05
  %v972 = vrsqrt.pop %v971
  %v973 = vmul.f32 %v579, %v972
  %975 = vset.pattern.permute.xlu0 3
  %976 = vperm.xlu0 %975, %v973
  %v977 = vpop.permute.xlu0 %976
  %v979 = vmul.f32 %v957, %v977
  %v980 = vmul.f32 %v958, %v977
  %v981 = vmul.f32 %v959, %v977
  %v982 = vmul.f32 %v960, %v977
  %983 = vset.pattern.permute.xlu0 4
  %984 = vperm.xlu0 %983, %v579
  %v985 = vpop.permute.xlu0 %984
  %v987 = vadd.f32 %v979, %v985
  %v988 = vadd.f32 %v980, %v985
  %v989 = vadd.f32 %v981, %v985
  %v990 = vadd.f32 %v982, %v985
  %v991 = vmax.f32 %v987, 0.0
  %v992 = vmax.f32 %v988, 0.0
  %v993 = vmax.f32 %v989, 0.0
  %v994 = vmax.f32 %v990, 0.0
  %995 = vst [vmem:[%s5] sm:$0xff] %v991
  %996 = vst [vmem:[%s5 + $0x8] sm:$0xff] %v992
  %s997 = scalar_lea.vmem %s5, 16
  %998 = vst [vmem:[%s997] sm:$0xff] %v993
  %999 = vst [vmem:[%s997 + $0x8] sm:$0xff] %v994
  // Predicated region
  $region22: #{ssb3_forward.1} parent=0 // pred_check
    _
  $region23: #{ssb3_forward.1} parent=0 // pred_check_branch
    %1001 = sbr.rel (0) target = $region25
  $region24: #{ssb3_forward.1} parent=0 // pred_region
    _
  $region25: #{ssb3_forward.1} parent=0 // pred_fallthru
    _
  // Predicated region
  $region26: #{ssb3_forward.1} parent=0 // pred_check
    _
  $region27: #{ssb3_forward.1} parent=0 // pred_check_branch
    %1003 = sbr.rel (0) target = $region29
  $region28: #{ssb3_forward.1} parent=0 // pred_region
    _
  $region29: #{ssb3_forward.1} parent=0 // pred_fallthru
    _

</llo_original>
